<compile_context>
chip_gen: v7x
topology: tpu7x:2x2x1
jax: 0.10.0
libtpu: 0.0.40
codegen_flags: <defaults>
</compile_context>

<pallas_src>
import functools

import jax
import jax.numpy as jnp
from jax.experimental import pallas as pl
from jax.experimental.pallas import tpu as pltpu


def _int_pow(x, n):
    """x ** n (n positive int) via binary exponentiation — VPU multiplies only."""
    acc = None
    base = x
    while True:
        if n & 1:
            acc = base if acc is None else acc * base
        n >>= 1
        if n == 0:
            return acc
        base = base * base


def _transe_dist_kernel(h_ref, l_ref, t_ref, ha_ref, la_ref, ta_ref, d_ref,
                        *, norm, true_b, block_b):
    # *_ref: (block_b, D) f32 tiles of the six gathered embedding streams.
    # d_ref: (2, block_b)  row 0 = dist(pos), row 1 = dist(neg)  (lane-dense).
    diff = h_ref[...] + l_ref[...] - t_ref[...]        # (block_b, D)
    diff_a = ha_ref[...] + la_ref[...] - ta_ref[...]   # (block_b, D)

    def pnorm(x):
        # (block_b, D) -> (1, block_b).  Transpose so the batch rides the 128-lane
        # axis and the D-reduction is a sublane reduce (XLU slot; VALU/EUP free).
        if norm == 1:
            xt = jnp.transpose(jnp.abs(x), (1, 0))              # (D, block_b)
            return jnp.sum(xt, axis=0, keepdims=True)
        if norm == 2:
            xt = jnp.transpose(x * x, (1, 0))
            return jnp.sqrt(jnp.sum(xt, axis=0, keepdims=True))
        # generic p
        p = norm
        if isinstance(p, int) and p > 2:
            powered = _int_pow(jnp.abs(x), p)                   # multiplies only
        else:
            powered = jnp.power(jnp.abs(x), float(p))
        s = jnp.sum(jnp.transpose(powered, (1, 0)), axis=0, keepdims=True)
        return jnp.power(s, 1.0 / float(p))                     # tiny (1, block_b)

    d = pnorm(diff)
    da = pnorm(diff_a)

    if true_b % block_b != 0:
        # Last block overhangs the true batch: zero the tail columns so clipped-DMA
        # garbage never leaves the kernel (static-B mask, couple of VPU ops).
        col = (pl.program_id(0) * block_b
               + jax.lax.broadcasted_iota(jnp.int32, (1, block_b), 1))
        valid = col < true_b
        d = jnp.where(valid, d, 0.0)
        da = jnp.where(valid, da, 0.0)

    d_ref[0:1, :] = d
    d_ref[1:2, :] = da


def _pick_block_b(B, D):
    """Largest batch tile that fits a v7x-safe VMEM budget; >=4 grid steps when possible."""
    lanes = ((max(D, 1) + 127) // 128) * 128          # VMEM lane padding of each row
    budget = 20 * 1024 * 1024                         # double-buffered input budget
    bytes_per_row = 6 * lanes * 4 * 2                 # 6 streams, f32, 2 pipeline buffers
    cap = max(128, min((budget // bytes_per_row) // 128 * 128, 8192))
    b8 = ((B + 7) // 8) * 8
    if b8 <= 512:
        return min(b8, cap)                           # tiny batch: one (or few) blocks
    # keep >= 4 grid steps when batch allows (2 pipelined steps per v7x TensorCore)
    quarter = ((B + 3) // 4 + 127) // 128 * 128
    return min(cap, max(128, quarter))


def transe_distances(h_vec, l_vec, t_vec, ha_vec, la_vec, ta_vec, *, norm):
    """Pallas kernel wrapper: returns (dist, dist_apos), each shaped (B,)."""
    B, D = h_vec.shape
    block_b = _pick_block_b(B, D)
    n_blocks = pl.cdiv(B, block_b)
    B_pad = n_blocks * block_b

    kernel = functools.partial(_transe_dist_kernel, norm=norm,
                               true_b=B, block_b=block_b)
    in_spec = pl.BlockSpec((block_b, D), lambda i: (i, 0))

    out = pl.pallas_call(
        kernel,
        out_shape=jax.ShapeDtypeStruct((2, B_pad), jnp.float32),
        grid_spec=pl.GridSpec(
            grid=(n_blocks,),
            in_specs=[in_spec] * 6,
            out_specs=pl.BlockSpec((2, block_b), lambda i: (0, i)),
        ),
        compiler_params=pltpu.CompilerParams(
            dimension_semantics=("parallel",),
            vmem_limit_bytes=32 * 1024 * 1024),
    )(h_vec.astype(jnp.float32), l_vec.astype(jnp.float32),
      t_vec.astype(jnp.float32), ha_vec.astype(jnp.float32),
      la_vec.astype(jnp.float32), ta_vec.astype(jnp.float32))

    return out[0, :B], out[1, :B]


class TransE:
    """JAX/Pallas port of the PyTorch TransE module (forward only)."""

    def __init__(self, e_dim, r_dim, norm, entity_num, relation_num, key):
        self.name = "TransE"
        self.dim = e_dim
        self.norm = norm
        self.entity_num = entity_num
        self.relation_num = relation_num

        _tmp = 6.0 / (self.dim ** 0.5)
        k_ent, k_rel = jax.random.split(key)
        ent = jax.random.uniform(k_ent, (entity_num, e_dim),
                                 dtype=jnp.float32, minval=-_tmp, maxval=_tmp)
        rel = jax.random.uniform(k_rel, (relation_num, e_dim),
                                 dtype=jnp.float32, minval=-_tmp, maxval=_tmp)
        # row-wise L2 normalization (matches torch.nn.functional.normalize p=2, dim=1)
        self.entity_embedding = ent / jnp.maximum(
            jnp.linalg.norm(ent, axis=1, keepdims=True), 1e-12)
        self.relation_embedding = rel / jnp.maximum(
            jnp.linalg.norm(rel, axis=1, keepdims=True), 1e-12)

    def __call__(self, h_batch, t_batch, l_batch,
                 h_apos_batch, t_apos_batch, l_apos_batch):
        # embedding lookups (nn.Embedding equivalent) -- plain JAX glue
        h_vec = jnp.take(self.entity_embedding, h_batch, axis=0)
        l_vec = jnp.take(self.relation_embedding, l_batch, axis=0)
        t_vec = jnp.take(self.entity_embedding, t_batch, axis=0)
        h_apos_vec = jnp.take(self.entity_embedding, h_apos_batch, axis=0)
        l_apos_vec = jnp.take(self.relation_embedding, l_apos_batch, axis=0)
        t_apos_vec = jnp.take(self.entity_embedding, t_apos_batch, axis=0)

        dist, dist_apos = transe_distances(
            h_vec, l_vec, t_vec, h_apos_vec, l_apos_vec, t_apos_vec,
            norm=self.norm)

        return dist, dist_apos, h_vec, t_vec, h_apos_vec, t_apos_vec


def _reference_norm(x, p):
    if p == 1:
        return jnp.sum(jnp.abs(x), axis=1)
    if p == 2:
        return jnp.sqrt(jnp.sum(x * x, axis=1))
    return jnp.power(jnp.sum(jnp.power(jnp.abs(x), float(p)), axis=1), 1.0 / p)


if __name__ == "__main__":
    key = jax.random.PRNGKey(0)
    k_model, k_h, k_t, k_l, k_ha, k_ta, k_la, k_rag = jax.random.split(key, 8)

    e_dim, r_dim = 32, 32
    entity_num, relation_num = 64, 16
    norm = 2
    batch = 8

    model = TransE(e_dim, r_dim, norm, entity_num, relation_num, k_model)

    h_batch = jax.random.randint(k_h, (batch,), 0, entity_num, dtype=jnp.int32)
    t_batch = jax.random.randint(k_t, (batch,), 0, entity_num, dtype=jnp.int32)
    l_batch = jax.random.randint(k_l, (batch,), 0, relation_num, dtype=jnp.int32)
    h_apos_batch = jax.random.randint(k_ha, (batch,), 0, entity_num, dtype=jnp.int32)
    t_apos_batch = jax.random.randint(k_ta, (batch,), 0, entity_num, dtype=jnp.int32)
    l_apos_batch = jax.random.randint(k_la, (batch,), 0, relation_num, dtype=jnp.int32)

    outs = model(h_batch, t_batch, l_batch,
                 h_apos_batch, t_apos_batch, l_apos_batch)
    outs = jax.block_until_ready(outs)
    dist, dist_apos, h_vec, t_vec, h_apos_vec, t_apos_vec = outs

    # pure-JAX reference check of the kernel's output (p=2)
    l_vec = jnp.take(model.relation_embedding, l_batch, axis=0)
    l_apos_vec = jnp.take(model.relation_embedding, l_apos_batch, axis=0)
    ref_dist = _reference_norm(h_vec + l_vec - t_vec, norm)
    ref_dist_apos = _reference_norm(h_apos_vec + l_apos_vec - t_apos_vec, norm)

    assert dist.shape == (batch,) and dist_apos.shape == (batch,)
    assert jnp.allclose(dist, ref_dist, atol=1e-5, rtol=1e-5)
    assert jnp.allclose(dist_apos, ref_dist_apos, atol=1e-5, rtol=1e-5)

    # exercise the L1 branch
    d1, da1 = transe_distances(h_vec, l_vec, t_vec,
                               h_apos_vec, l_apos_vec, t_apos_vec, norm=1)
    d1, da1 = jax.block_until_ready((d1, da1))
    assert jnp.allclose(d1, _reference_norm(h_vec + l_vec - t_vec, 1),
                        atol=1e-5, rtol=1e-5)
    assert jnp.allclose(da1, _reference_norm(h_apos_vec + l_apos_vec - t_apos_vec, 1),
                        atol=1e-5, rtol=1e-5)

    # exercise the generic integer-p (repeated-multiply) branch
    d3, da3 = transe_distances(h_vec, l_vec, t_vec,
                               h_apos_vec, l_apos_vec, t_apos_vec, norm=3)
    d3, da3 = jax.block_until_ready((d3, da3))
    assert jnp.allclose(d3, _reference_norm(h_vec + l_vec - t_vec, 3),
                        atol=1e-4, rtol=1e-4)
    assert jnp.allclose(da3, _reference_norm(h_apos_vec + l_apos_vec - t_apos_vec, 3),
                        atol=1e-4, rtol=1e-4)

    # exercise the ragged-tail path (B not a multiple of 8 -> in-kernel mask)
    kr = jax.random.split(k_rag, 6)
    ragged = [jax.random.normal(kr[i], (10, e_dim), jnp.float32) for i in range(6)]
    dr, dar = transe_distances(*ragged, norm=2)
    dr, dar = jax.block_until_ready((dr, dar))
    assert dr.shape == (10,) and dar.shape == (10,)
    assert jnp.allclose(dr, _reference_norm(ragged[0] + ragged[1] - ragged[2], 2),
                        atol=1e-5, rtol=1e-5)
    assert jnp.allclose(dar, _reference_norm(ragged[3] + ragged[4] - ragged[5], 2),
                        atol=1e-5, rtol=1e-5)

    print("KERNEL_OK")
</pallas_src>

<mosaic_0001>
module attributes {stable_mosaic.version = 11 : i64} {
  func.func @_transe_dist_kernel(%arg0: i32, %arg1: memref<8x32xf32, #tpu.memory_space<vmem>>, %arg2: memref<8x32xf32, #tpu.memory_space<vmem>>, %arg3: memref<8x32xf32, #tpu.memory_space<vmem>>, %arg4: memref<8x32xf32, #tpu.memory_space<vmem>>, %arg5: memref<8x32xf32, #tpu.memory_space<vmem>>, %arg6: memref<8x32xf32, #tpu.memory_space<vmem>>, %arg7: memref<2x8xf32, #tpu.memory_space<vmem>>) attributes {dimension_semantics = [#tpu.dimension_semantics<parallel>], iteration_bounds = array<i64: 1>, scalar_prefetch = 0 : i64, scratch_operands = 0 : i64, tpu.core_type = #tpu.core_type<tc>, window_params = [{transform_indices = @transform_0, window_bounds = array<i64: 8, 32>}, {transform_indices = @transform_1, window_bounds = array<i64: 8, 32>}, {transform_indices = @transform_2, window_bounds = array<i64: 8, 32>}, {transform_indices = @transform_3, window_bounds = array<i64: 8, 32>}, {transform_indices = @transform_4, window_bounds = array<i64: 8, 32>}, {transform_indices = @transform_5, window_bounds = array<i64: 8, 32>}, {transform_indices = @transform_6, window_bounds = array<i64: 2, 8>}]} {
    %c0 = arith.constant 0 : index
    %c0_0 = arith.constant 0 : index
    %0 = vector.load %arg1[%c0, %c0_0] : memref<8x32xf32, #tpu.memory_space<vmem>>, vector<8x32xf32>
    %c0_1 = arith.constant 0 : index
    %c0_2 = arith.constant 0 : index
    %1 = vector.load %arg2[%c0_1, %c0_2] : memref<8x32xf32, #tpu.memory_space<vmem>>, vector<8x32xf32>
    %2 = arith.addf %0, %1 : vector<8x32xf32>
    %c0_3 = arith.constant 0 : index
    %c0_4 = arith.constant 0 : index
    %3 = vector.load %arg3[%c0_3, %c0_4] : memref<8x32xf32, #tpu.memory_space<vmem>>, vector<8x32xf32>
    %4 = arith.subf %2, %3 : vector<8x32xf32>
    %c0_5 = arith.constant 0 : index
    %c0_6 = arith.constant 0 : index
    %5 = vector.load %arg4[%c0_5, %c0_6] : memref<8x32xf32, #tpu.memory_space<vmem>>, vector<8x32xf32>
    %c0_7 = arith.constant 0 : index
    %c0_8 = arith.constant 0 : index
    %6 = vector.load %arg5[%c0_7, %c0_8] : memref<8x32xf32, #tpu.memory_space<vmem>>, vector<8x32xf32>
    %7 = arith.addf %5, %6 : vector<8x32xf32>
    %c0_9 = arith.constant 0 : index
    %c0_10 = arith.constant 0 : index
    %8 = vector.load %arg6[%c0_9, %c0_10] : memref<8x32xf32, #tpu.memory_space<vmem>>, vector<8x32xf32>
    %9 = arith.subf %7, %8 : vector<8x32xf32>
    %10 = arith.mulf %4, %4 : vector<8x32xf32>
    %11 = tpu.transpose %10, [1, 0] : vector<8x32xf32> -> vector<32x8xf32>
    %cst = arith.constant dense<0.000000e+00> : vector<8xf32>
    %12 = vector.multi_reduction <add>, %11, %cst [0] : vector<32x8xf32> to vector<8xf32>
    %13 = vector.shape_cast %12 : vector<8xf32> to vector<1x8xf32>
    %14 = math.sqrt %13 : vector<1x8xf32>
    %15 = arith.mulf %9, %9 : vector<8x32xf32>
    %16 = tpu.transpose %15, [1, 0] : vector<8x32xf32> -> vector<32x8xf32>
    %cst_11 = arith.constant dense<0.000000e+00> : vector<8xf32>
    %17 = vector.multi_reduction <add>, %16, %cst_11 [0] : vector<32x8xf32> to vector<8xf32>
    %18 = vector.shape_cast %17 : vector<8xf32> to vector<1x8xf32>
    %19 = math.sqrt %18 : vector<1x8xf32>
    %c0_12 = arith.constant 0 : index
    %c0_13 = arith.constant 0 : index
    %20 = vector.load %arg7[%c0_12, %c0_13] : memref<2x8xf32, #tpu.memory_space<vmem>>, vector<1x8xf32>
    tpu.vector_store %arg7[%c0_12, %c0_13], %14 {strides = array<i32>} : memref<2x8xf32, #tpu.memory_space<vmem>>, vector<1x8xf32>,
    %c1 = arith.constant 1 : index
    %c0_14 = arith.constant 0 : index
    %21 = vector.load %arg7[%c1, %c0_14] : memref<2x8xf32, #tpu.memory_space<vmem>>, vector<1x8xf32>
    tpu.vector_store %arg7[%c1, %c0_14], %19 {strides = array<i32>} : memref<2x8xf32, #tpu.memory_space<vmem>>, vector<1x8xf32>,
    return
  }
  func.func @transform_0(%arg0: i32) -> (i32, i32) {
    %c0_i32 = arith.constant 0 : i32
    %c0_i32_0 = arith.constant 0 : i32
    return %arg0, %c0_i32 : i32, i32
  }
  func.func @transform_1(%arg0: i32) -> (i32, i32) {
    %c0_i32 = arith.constant 0 : i32
    %c0_i32_0 = arith.constant 0 : i32
    return %arg0, %c0_i32 : i32, i32
  }
  func.func @transform_2(%arg0: i32) -> (i32, i32) {
    %c0_i32 = arith.constant 0 : i32
    %c0_i32_0 = arith.constant 0 : i32
    return %arg0, %c0_i32 : i32, i32
  }
  func.func @transform_3(%arg0: i32) -> (i32, i32) {
    %c0_i32 = arith.constant 0 : i32
    %c0_i32_0 = arith.constant 0 : i32
    return %arg0, %c0_i32 : i32, i32
  }
  func.func @transform_4(%arg0: i32) -> (i32, i32) {
    %c0_i32 = arith.constant 0 : i32
    %c0_i32_0 = arith.constant 0 : i32
    return %arg0, %c0_i32 : i32, i32
  }
  func.func @transform_5(%arg0: i32) -> (i32, i32) {
    %c0_i32 = arith.constant 0 : i32
    %c0_i32_0 = arith.constant 0 : i32
    return %arg0, %c0_i32 : i32, i32
  }
  func.func @transform_6(%arg0: i32) -> (i32, i32) {
    %c0_i32 = arith.constant 0 : i32
    %c0_i32_0 = arith.constant 0 : i32
    return %c0_i32, %arg0 : i32, i32
  }
}

</mosaic_0001>

<llo_original>
// kernel: tpu_custom_call.1
$region0: #{tpu_custom_call.1}
  #allocation0 [shape = 'u32[]', space=smem, size = 0x4, offset = 0x4, fixed_abs, tag = 'smem constant byte address 0x4 - core index']
  #allocation1 [shape = 'u32[144,128]{1,0:T(1,128)}', space=vmem, size = 0x12000, scoped, tag = 'internal scratch']
  %s0 = inlined_call_operand.hbm [shape: f32[8,32], index: 0, kind: input, shape index: {}]
  %s1 = inlined_call_operand.hbm [shape: f32[8,32], index: 1, kind: input, shape index: {}]
  %s2 = inlined_call_operand.hbm [shape: f32[8,32], index: 2, kind: input, shape index: {}]
  %s3 = inlined_call_operand.vmem [shape: f32[8,32], index: 3, kind: input, shape index: {}]
  %s4 = inlined_call_operand.hbm [shape: f32[8,32], index: 4, kind: input, shape index: {}]
  %s5 = inlined_call_operand.vmem [shape: f32[8,32], index: 5, kind: input, shape index: {}]
  %s6 = inlined_call_operand.hbm [shape: f32[2,8], index: 6, kind: output, shape index: {}]
  %s7 = sld [smem:[#allocation0]]
  $region50: #{tpu_custom_call.1} parent=0
    _
  %s9 = ssub.s32 1, %s7
  %s10 = scalar_select 0, %s9, %s7
  $region1: #{tpu_custom_call.1} parent=0
    #allocation2 [shape = 'u8[4096]{0}', space=vmem, size = 0x1000, scoped, tag = 'input window, operand 0, single buffered']
    #allocation3 [shape = 's32[1]{0}', space=sflag, size = 0x4, scoped, tag = 'scoped memory for tpu_custom_call.1']
    #allocation4 [shape = 's32[1]{0}', space=sflag, size = 0x4, scoped, tag = 'scoped memory for tpu_custom_call.1']
    #allocation5 [shape = 'u8[4096]{0}', space=vmem, size = 0x1000, scoped, tag = 'input window, operand 1, single buffered']
    #allocation6 [shape = 's32[1]{0}', space=sflag, size = 0x4, scoped, tag = 'scoped memory for tpu_custom_call.1']
    #allocation7 [shape = 'u8[4096]{0}', space=vmem, size = 0x1000, scoped, tag = 'input window, operand 2, single buffered']
    #allocation8 [shape = 'u8[4096]{0}', space=vmem, size = 0x1000, scoped, tag = 'input window, operand 4, single buffered']
    #allocation9 [shape = 's32[1]{0}', space=sflag, size = 0x4, scoped, tag = 'scoped memory for tpu_custom_call.1']
    #allocation10 [shape = 'u8[1024]{0}', space=vmem, size = 0x400, scoped, tag = 'output window, operand 0, single buffered']
    %11 = vsyncpa [#allocation3], 0
    %12 = vsyncpa [#allocation6], 0
    %13 = vsyncpa [#allocation9], 0
    %14 = vsyncpa [#allocation4], 0
    // Predicated region
    $region2: #{tpu_custom_call.1} parent=1 // pred_check
      _
    $region3: #{tpu_custom_call.1} parent=1 // pred_check_branch
      %16 = sbr.rel (0) target = $region5
    $region4: #{tpu_custom_call.1} parent=1 // pred_region
      %s18 = ssub.s32 128, 128
      %19 = vsyncadd [#allocation3], %s18
      %s21 = sshll.u32 [#allocation2], 4
      %s22 = int_to_ptr.vmem [resolvable:$true] %s21
      %24 = dma.hbm_to_vmem [thread:$0]  %s0, 128, %s22, [#allocation3]
    $region5: #{tpu_custom_call.1} parent=1 // pred_fallthru
      _
    // Predicated region
    $region6: #{tpu_custom_call.1} parent=1 // pred_check
      _
    $region7: #{tpu_custom_call.1} parent=1 // pred_check_branch
      %26 = sbr.rel (0) target = $region9
    $region8: #{tpu_custom_call.1} parent=1 // pred_region
      %s28 = ssub.s32 128, 128
      %29 = vsyncadd [#allocation6], %s28
      %s31 = sshll.u32 [#allocation5], 4
      %s32 = int_to_ptr.vmem [resolvable:$true] %s31
      %34 = dma.hbm_to_vmem [thread:$0]  %s1, 128, %s32, [#allocation6]
    $region9: #{tpu_custom_call.1} parent=1 // pred_fallthru
      _
    // Predicated region
    $region10: #{tpu_custom_call.1} parent=1 // pred_check
      _
    $region11: #{tpu_custom_call.1} parent=1 // pred_check_branch
      %36 = sbr.rel (0) target = $region13
    $region12: #{tpu_custom_call.1} parent=1 // pred_region
      %s38 = ssub.s32 128, 128
      %39 = vsyncadd [#allocation6], %s38
      %s41 = sshll.u32 [#allocation7], 4
      %s42 = int_to_ptr.vmem [resolvable:$true] %s41
      %44 = dma.hbm_to_vmem [thread:$0]  %s2, 128, %s42, [#allocation6]
    $region13: #{tpu_custom_call.1} parent=1 // pred_fallthru
      _
    // Predicated region
    $region14: #{tpu_custom_call.1} parent=1 // pred_check
      _
    $region15: #{tpu_custom_call.1} parent=1 // pred_check_branch
      %46 = sbr.rel (0) target = $region17
    $region16: #{tpu_custom_call.1} parent=1 // pred_region
      _
    $region17: #{tpu_custom_call.1} parent=1 // pred_fallthru
      _
    // Predicated region
    $region18: #{tpu_custom_call.1} parent=1 // pred_check
      _
    $region19: #{tpu_custom_call.1} parent=1 // pred_check_branch
      %48 = sbr.rel (0) target = $region21
    $region20: #{tpu_custom_call.1} parent=1 // pred_region
      %s50 = ssub.s32 128, 128
      %51 = vsyncadd [#allocation9], %s50
      %s53 = sshll.u32 [#allocation8], 4
      %s54 = int_to_ptr.vmem [resolvable:$true] %s53
      %56 = dma.hbm_to_vmem [thread:$0]  %s4, 128, %s54, [#allocation9]
    $region21: #{tpu_custom_call.1} parent=1 // pred_fallthru
      _
    // Predicated region
    $region22: #{tpu_custom_call.1} parent=1 // pred_check
      _
    $region23: #{tpu_custom_call.1} parent=1 // pred_check_branch
      %58 = sbr.rel (0) target = $region25
    $region24: #{tpu_custom_call.1} parent=1 // pred_region
      _
    $region25: #{tpu_custom_call.1} parent=1 // pred_fallthru
      _
    // Predicated region
    $region26: #{tpu_custom_call.1} parent=1 // pred_check
      _
    $region27: #{tpu_custom_call.1} parent=1 // pred_check_branch
      %60 = sbr.rel (0) target = $region29
    $region28: #{tpu_custom_call.1} parent=1 // pred_region
      %61 = dma.done [#allocation3], 128
    $region29: #{tpu_custom_call.1} parent=1 // pred_fallthru
      _
    // Predicated region
    $region30: #{tpu_custom_call.1} parent=1 // pred_check
      _
    $region31: #{tpu_custom_call.1} parent=1 // pred_check_branch
      %63 = sbr.rel (0) target = $region33
    $region32: #{tpu_custom_call.1} parent=1 // pred_region
      %64 = dma.done [#allocation6], 128
    $region33: #{tpu_custom_call.1} parent=1 // pred_fallthru
      _
    // Predicated region
    $region34: #{tpu_custom_call.1} parent=1 // pred_check
      _
    $region35: #{tpu_custom_call.1} parent=1 // pred_check_branch
      %66 = sbr.rel (0) target = $region37
    $region36: #{tpu_custom_call.1} parent=1 // pred_region
      %67 = dma.done [#allocation6], 128
    $region37: #{tpu_custom_call.1} parent=1 // pred_fallthru
      _
    // Predicated region
    $region38: #{tpu_custom_call.1} parent=1 // pred_check
      _
    $region39: #{tpu_custom_call.1} parent=1 // pred_check_branch
      %69 = sbr.rel (0) target = $region41
    $region40: #{tpu_custom_call.1} parent=1 // pred_region
      %70 = dma.done [#allocation9], 128
    $region41: #{tpu_custom_call.1} parent=1 // pred_fallthru
      _
    %v71 = vld [vmem:[#allocation2] sm:$0xff]
    %v72 = vld [vmem:[#allocation5] sm:$0xff]
    %v73 = vadd.f32 %v71, %v72
    %v74 = vld [vmem:[#allocation7] sm:$0xff]
    %v75 = vsub.f32 %v73, %v74
    %v76 = vld [vmem:[%s3] sm:$0xff]
    %v77 = vld [vmem:[#allocation8] sm:$0xff]
    %v78 = vadd.f32 %v76, %v77
    %v79 = vld [vmem:[%s5] sm:$0xff]
    %v80 = vsub.f32 %v78, %v79
    %v81 = vmul.f32 %v75, %v75
    %82 = vxpose.xlu0.b32.start [1/16] %v81, 128
    %83 = vxpose.xlu0.b32.cont [2/16] 0.0, 128
    %84 = vxpose.xlu0.b32.cont [3/16] 0.0, 128
    %85 = vxpose.xlu0.b32.cont [4/16] 0.0, 128
    %86 = vxpose.xlu0.b32.cont [5/16] 0.0, 128
    %87 = vxpose.xlu0.b32.cont [6/16] 0.0, 128
    %88 = vxpose.xlu0.b32.cont [7/16] 0.0, 128
    %89 = vxpose.xlu0.b32.cont [8/16] 0.0, 128
    %90 = vxpose.xlu0.b32.cont [9/16] 0.0, 128
    %91 = vxpose.xlu0.b32.cont [10/16] 0.0, 128
    %92 = vxpose.xlu0.b32.cont [11/16] 0.0, 128
    %93 = vxpose.xlu0.b32.cont [12/16] 0.0, 128
    %94 = vxpose.xlu0.b32.cont [13/16] 0.0, 128
    %95 = vxpose.xlu0.b32.cont [14/16] 0.0, 128
    %96 = vxpose.xlu0.b32.cont [15/16] 0.0, 128
    %97 = vxpose.xlu0.b32.end [16/16] 0.0, 128
    %v98 = vpop.trf.xlu0
    %v99 = vpop.trf.xlu0
    %v100 = vpop.trf.xlu0
    %v101 = vpop.trf.xlu0
    %v102 = vpop.trf.xlu0
    %v103 = vpop.trf.xlu0
    %v104 = vpop.trf.xlu0
    %v105 = vpop.trf.xlu0
    %v106 = vpop.trf.xlu0
    %v107 = vpop.trf.xlu0
    %v108 = vpop.trf.xlu0
    %v109 = vpop.trf.xlu0
    %v110 = vpop.trf.xlu0
    %v111 = vpop.trf.xlu0
    %v112 = vpop.trf.xlu0
    %v113 = vpop.trf.xlu0
    %vm114 = vcmask 64512
    %v115 = vsel %vm114, %v98, 0.0
    %v116 = vsel %vm114, %v99, 0.0
    %v117 = vadd.f32 %v115, %v116
    %v118 = vsel %vm114, %v100, 0.0
    %v119 = vadd.f32 %v117, %v118
    %v120 = vsel %vm114, %v101, 0.0
    %v121 = vadd.f32 %v119, %v120
    %v122 = vrot.slane %v121, 4
    %v123 = vadd.f32 %v121, %v122
    %v124 = vrot.slane %v123, 2
    %v125 = vadd.f32 %v123, %v124
    %v126 = vrot.slane %v125, 1
    %v127 = vadd.f32 %v125, %v126
    %v128 = vrsqrt.pop %v127
    %v129 = vmul.f32 %v127, %v128
    %vm130 = vcmp.eq.f32.partialorder %v127, inf
    %v131 = vsel %vm130, %v127, %v129
    %vm132 = vcmp.eq.f32.partialorder %v127, 0.0
    %v133 = vand.u32 %v127, 2147483648
    %v134 = vsel %vm132, %v133, %v131
    %v135 = vmul.f32 %v80, %v80
    %136 = vxpose.xlu0.b32.start [1/16] %v135, 128
    %137 = vxpose.xlu0.b32.cont [2/16] 0.0, 128
    %138 = vxpose.xlu0.b32.cont [3/16] 0.0, 128
    %139 = vxpose.xlu0.b32.cont [4/16] 0.0, 128
    %140 = vxpose.xlu0.b32.cont [5/16] 0.0, 128
    %141 = vxpose.xlu0.b32.cont [6/16] 0.0, 128
    %142 = vxpose.xlu0.b32.cont [7/16] 0.0, 128
    %143 = vxpose.xlu0.b32.cont [8/16] 0.0, 128
    %144 = vxpose.xlu0.b32.cont [9/16] 0.0, 128
    %145 = vxpose.xlu0.b32.cont [10/16] 0.0, 128
    %146 = vxpose.xlu0.b32.cont [11/16] 0.0, 128
    %147 = vxpose.xlu0.b32.cont [12/16] 0.0, 128
    %148 = vxpose.xlu0.b32.cont [13/16] 0.0, 128
    %149 = vxpose.xlu0.b32.cont [14/16] 0.0, 128
    %150 = vxpose.xlu0.b32.cont [15/16] 0.0, 128
    %151 = vxpose.xlu0.b32.end [16/16] 0.0, 128
    %v152 = vpop.trf.xlu0
    %v153 = vpop.trf.xlu0
    %v154 = vpop.trf.xlu0
    %v155 = vpop.trf.xlu0
    %v156 = vpop.trf.xlu0
    %v157 = vpop.trf.xlu0
    %v158 = vpop.trf.xlu0
    %v159 = vpop.trf.xlu0
    %v160 = vpop.trf.xlu0
    %v161 = vpop.trf.xlu0
    %v162 = vpop.trf.xlu0
    %v163 = vpop.trf.xlu0
    %v164 = vpop.trf.xlu0
    %v165 = vpop.trf.xlu0
    %v166 = vpop.trf.xlu0
    %v167 = vpop.trf.xlu0
    %v168 = vsel %vm114, %v152, 0.0
    %v169 = vsel %vm114, %v153, 0.0
    %v170 = vadd.f32 %v168, %v169
    %v171 = vsel %vm114, %v154, 0.0
    %v172 = vadd.f32 %v170, %v171
    %v173 = vsel %vm114, %v155, 0.0
    %v174 = vadd.f32 %v172, %v173
    %v175 = vrot.slane %v174, 4
    %v176 = vadd.f32 %v174, %v175
    %v177 = vrot.slane %v176, 2
    %v178 = vadd.f32 %v176, %v177
    %v179 = vrot.slane %v178, 1
    %v180 = vadd.f32 %v178, %v179
    %v181 = vrsqrt.pop %v180
    %v182 = vmul.f32 %v180, %v181
    %vm183 = vcmp.eq.f32.partialorder %v180, inf
    %v184 = vsel %vm183, %v180, %v182
    %vm185 = vcmp.eq.f32.partialorder %v180, 0.0
    %v186 = vand.u32 %v180, 2147483648
    %v187 = vsel %vm185, %v186, %v184
    %vm188 = vcmask 57344
    %189 = vst.msk [vmem:[#allocation10] sm:$0x1] %vm188, %v134
    %190 = vst.msk [vmem:[#allocation10 + $0x1] sm:$0x1] %vm188, %v187
    // Predicated region
    $region42: #{tpu_custom_call.1} parent=1 // pred_check
      _
    $region43: #{tpu_custom_call.1} parent=1 // pred_check_branch
      %192 = sbr.rel (0) target = $region45
    $region44: #{tpu_custom_call.1} parent=1 // pred_region
      %s194 = ssub.s32 32, 32
      %195 = vsyncadd [#allocation4], %s194
      %s197 = sshll.u32 [#allocation10], 4
      %s198 = int_to_ptr.vmem [resolvable:$true] %s197
      %200 = dma.vmem_to_hbm [thread:$0]  %s198, 32, %s6, [#allocation4]
    $region45: #{tpu_custom_call.1} parent=1 // pred_fallthru
      _
    // Predicated region
    $region46: #{tpu_custom_call.1} parent=1 // pred_check
      _
    $region47: #{tpu_custom_call.1} parent=1 // pred_check_branch
      %202 = sbr.rel (0) target = $region49
    $region48: #{tpu_custom_call.1} parent=1 // pred_region
      %203 = dma.done [#allocation4], 32
    $region49: #{tpu_custom_call.1} parent=1 // pred_fallthru
      _
    %204 = vsyncpa [#allocation3], 1
    %205 = vsyncpa [#allocation6], 1
    %206 = vsyncpa [#allocation9], 1
    %207 = vsyncpa [#allocation4], 1

</llo_original>
